<compile_context>
chip_gen: v5e
topology: v5e:2x2
jax: 0.10.0
libtpu: 0.0.40
codegen_flags: <defaults>
</compile_context>

<pallas_src>
import functools

import jax
import jax.numpy as jnp
from jax.experimental import pallas as pl
from jax.experimental.pallas import tpu as pltpu

_INV_SQRT2 = 0.7071067811865476  # 1/sqrt(2), hoisted constant


def _mlp_kernel(x_ref, w1_ref, b1_ref, w2_ref, b2_ref, o_ref, acc_ref):
    # x_ref:  (tm, C)   token tile (native dtype)
    # w1_ref: (C, th)   fc1 weight slice (in x hidden-tile)
    # b1_ref: (1, th)   fc1 bias slice
    # w2_ref: (th, O)   fc2 weight slice (hidden-tile x out)
    # b2_ref: (1, O)    fc2 bias
    # o_ref:  (tm, O)   output tile
    # acc_ref:(tm, O)   f32 accumulator scratch (persists across hidden tiles)
    k = pl.program_id(1)

    @pl.when(k == 0)
    def _():
        acc_ref[...] = jnp.zeros_like(acc_ref)

    # fc1 partial on this hidden slice; MXU accumulates in f32.
    h = jnp.dot(x_ref[...], w1_ref[...], preferred_element_type=jnp.float32)
    h = h + b1_ref[...].astype(jnp.float32)

    # Exact GELU (erf-based, matches torch.nn.GELU default) in f32.
    h = 0.5 * h * (1.0 + jax.lax.erf(h * _INV_SQRT2))

    # Single downcast to the fc2 operand dtype, then accumulate fc2 partial.
    h = h.astype(w2_ref.dtype)
    acc_ref[...] += jnp.dot(h, w2_ref[...], preferred_element_type=jnp.float32)

    @pl.when(k == pl.num_programs(1) - 1)
    def _():
        o_ref[...] = (acc_ref[...]
                      + b2_ref[...].astype(jnp.float32)).astype(o_ref.dtype)


def _round_up(a, b):
    return (a + b - 1) // b * b


@functools.partial(jax.jit, static_argnames=("tile_m", "tile_h"))
def mlp_pallas(x, w1, b1, w2, b2, *, tile_m=256, tile_h=512):
    """x: (B, N, C); w1: (C, H); b1: (H,); w2: (H, O); b2: (O,) -> (B, N, O)."""
    B, N, C = x.shape
    H = w1.shape[1]
    O = w2.shape[1]
    M = B * N

    # Token tile: large by default (MXU-sized), clamped for small problems;
    # pad M so the grid divides evenly (padded rows are sliced off at the end).
    tm = min(tile_m, M)
    Mp = _round_up(M, tm)

    # Hidden tile: multiple of 128 when it divides H, else keep H whole.
    th = tile_h if (H % tile_h == 0) else H

    x2 = x.reshape(M, C)
    if Mp != M:
        x2 = jnp.pad(x2, ((0, Mp - M), (0, 0)))
    b1_2 = b1.reshape(1, H)
    b2_2 = b2.reshape(1, O)

    itemsize = jnp.dtype(x.dtype).itemsize
    cost = pl.CostEstimate(
        flops=int(2 * Mp * (C * H + H * O)),
        transcendentals=int(Mp * H),
        bytes_accessed=int(
            Mp * C * itemsize + Mp * O * itemsize
            + w1.size * jnp.dtype(w1.dtype).itemsize
            + w2.size * jnp.dtype(w2.dtype).itemsize
            + b1.size * jnp.dtype(b1.dtype).itemsize
            + b2.size * jnp.dtype(b2.dtype).itemsize),
    )

    out = pl.pallas_call(
        _mlp_kernel,
        out_shape=jax.ShapeDtypeStruct((Mp, O), x.dtype),
        grid_spec=pltpu.PrefetchScalarGridSpec(
            num_scalar_prefetch=0,
            grid=(Mp // tm, H // th),
            in_specs=[
                pl.BlockSpec((tm, C), lambda i, k: (i, 0)),   # x tile
                pl.BlockSpec((C, th), lambda i, k: (0, k)),   # w1 slice
                pl.BlockSpec((1, th), lambda i, k: (0, k)),   # b1 slice
                pl.BlockSpec((th, O), lambda i, k: (k, 0)),   # w2 slice
                pl.BlockSpec((1, O), lambda i, k: (0, 0)),    # b2
            ],
            out_specs=pl.BlockSpec((tm, O), lambda i, k: (i, 0)),
            scratch_shapes=[pltpu.VMEM((tm, O), jnp.float32)],
        ),
        compiler_params=pltpu.CompilerParams(
            dimension_semantics=("parallel", "arbitrary"),
        ),
        cost_estimate=cost,
    )(x2, w1, b1_2, w2, b2_2)

    if Mp != M:
        out = out[:M]
    return out.reshape(B, N, O)


def init_mlp_params(key, in_features, hidden_features, out_features,
                    dtype=jnp.float32):
    """Deterministic init mimicking nn.Linear default (uniform +/- 1/sqrt(fan_in)).
    Weights are stored as (in, out) so the kernel does x @ W."""
    k1, k2, k3, k4 = jax.random.split(key, 4)
    bound1 = 1.0 / jnp.sqrt(in_features)
    bound2 = 1.0 / jnp.sqrt(hidden_features)
    w1 = jax.random.uniform(k1, (in_features, hidden_features), dtype,
                            minval=-bound1, maxval=bound1)
    b1 = jax.random.uniform(k2, (hidden_features,), dtype,
                            minval=-bound1, maxval=bound1)
    w2 = jax.random.uniform(k3, (hidden_features, out_features), dtype,
                            minval=-bound2, maxval=bound2)
    b2 = jax.random.uniform(k4, (out_features,), dtype,
                            minval=-bound2, maxval=bound2)
    return w1, b1, w2, b2


if __name__ == "__main__":
    key = jax.random.PRNGKey(0)
    kx, kp = jax.random.split(key)

    B, N = 2, 8            # batch, sequence length (tokens)
    in_features = 16
    hidden_features = 32
    out_features = 16

    x = jax.random.normal(kx, (B, N, in_features), dtype=jnp.float32)
    w1, b1, w2, b2 = init_mlp_params(kp, in_features, hidden_features,
                                     out_features)

    out = mlp_pallas(x, w1, b1, w2, b2)
    jax.block_until_ready(out)

    # Reference check in plain JAX (same math as the PyTorch module, eval mode).
    h_ref = jnp.dot(x, w1) + b1
    h_ref = 0.5 * h_ref * (1.0 + jax.lax.erf(h_ref / jnp.sqrt(2.0)))
    y_ref = jnp.dot(h_ref, w2) + b2
    assert out.shape == (B, N, out_features)
    assert jnp.allclose(out, y_ref, atol=1e-5, rtol=1e-5)

    print("KERNEL_OK")
</pallas_src>

<mosaic_0001>
module attributes {stable_mosaic.version = 11 : i64} {
  func.func @_mlp_kernel(%arg0: i32, %arg1: i32, %arg2: memref<16x16xf32, #tpu.memory_space<vmem>>, %arg3: memref<16x32xf32, #tpu.memory_space<vmem>>, %arg4: memref<1x32xf32, #tpu.memory_space<vmem>>, %arg5: memref<32x16xf32, #tpu.memory_space<vmem>>, %arg6: memref<1x16xf32, #tpu.memory_space<vmem>>, %arg7: memref<16x16xf32, #tpu.memory_space<vmem>>, %arg8: memref<16x16xf32, #tpu.memory_space<vmem>>) attributes {dimension_semantics = [#tpu.dimension_semantics<parallel>, #tpu.dimension_semantics<arbitrary>], iteration_bounds = array<i64: 1, 1>, scalar_prefetch = 0 : i64, scratch_operands = 1 : i64, tpu.core_type = #tpu.core_type<tc>, window_params = [{transform_indices = @transform_0, window_bounds = array<i64: 16, 16>}, {transform_indices = @transform_1, window_bounds = array<i64: 16, 32>}, {transform_indices = @transform_2, window_bounds = array<i64: 1, 32>}, {transform_indices = @transform_3, window_bounds = array<i64: 32, 16>}, {pipeline_mode = #tpu.pipeline_mode<synchronous>, transform_indices = @transform_4, window_bounds = array<i64: 1, 16>}, {transform_indices = @transform_5, window_bounds = array<i64: 16, 16>}]} {
    %c0_i32 = arith.constant 0 : i32
    %0 = arith.cmpi eq, %arg1, %c0_i32 : i32
    %1 = arith.extui %0 : i1 to i32
    %c0_i32_0 = arith.constant 0 : i32
    %2 = arith.cmpi ne, %1, %c0_i32_0 : i32
    scf.if %2 {
      %cst_18 = arith.constant 0.000000e+00 : f32
      %25 = vector.broadcast %cst_18 : f32 to vector<16x16xf32>
      %c0_19 = arith.constant 0 : index
      %c0_20 = arith.constant 0 : index
      %26 = vector.load %arg8[%c0_19, %c0_20] : memref<16x16xf32, #tpu.memory_space<vmem>>, vector<16x16xf32>
      tpu.vector_store %arg8[%c0_19, %c0_20], %25 {strides = array<i32>} : memref<16x16xf32, #tpu.memory_space<vmem>>, vector<16x16xf32>,
    } else {
    }
    %c0 = arith.constant 0 : index
    %c0_1 = arith.constant 0 : index
    %3 = vector.load %arg2[%c0, %c0_1] : memref<16x16xf32, #tpu.memory_space<vmem>>, vector<16x16xf32>
    %c0_2 = arith.constant 0 : index
    %c0_3 = arith.constant 0 : index
    %4 = vector.load %arg3[%c0_2, %c0_3] : memref<16x32xf32, #tpu.memory_space<vmem>>, vector<16x32xf32>
    %cst = arith.constant dense<0.000000e+00> : vector<16x32xf32>
    %5 = tpu.matmul %3, %4, %cst {dimension_numbers = #tpu.dot_dimension_numbers<[1], [0], [0], [1], [0, 0, 1, 1], [], []>} : vector<16x16xf32>, vector<16x32xf32>, vector<16x32xf32> -> vector<16x32xf32>
    %c0_4 = arith.constant 0 : index
    %c0_5 = arith.constant 0 : index
    %6 = vector.load %arg4[%c0_4, %c0_5] : memref<1x32xf32, #tpu.memory_space<vmem>>, vector<1x32xf32>
    %7 = vector.broadcast %6 : vector<1x32xf32> to vector<16x32xf32>
    %8 = arith.addf %5, %7 : vector<16x32xf32>
    %cst_6 = arith.constant 5.000000e-01 : f32
    %9 = vector.broadcast %cst_6 : f32 to vector<16x32xf32>
    %10 = arith.mulf %9, %8 : vector<16x32xf32>
    %cst_7 = arith.constant 0.707106769 : f32
    %11 = vector.broadcast %cst_7 : f32 to vector<16x32xf32>
    %12 = arith.mulf %8, %11 : vector<16x32xf32>
    %13 = math.erf %12 : vector<16x32xf32>
    %cst_8 = arith.constant 1.000000e+00 : f32
    %14 = vector.broadcast %cst_8 : f32 to vector<16x32xf32>
    %15 = arith.addf %14, %13 : vector<16x32xf32>
    %16 = arith.mulf %10, %15 : vector<16x32xf32>
    %c0_9 = arith.constant 0 : index
    %c0_10 = arith.constant 0 : index
    %17 = vector.load %arg8[%c0_9, %c0_10] : memref<16x16xf32, #tpu.memory_space<vmem>>, vector<16x16xf32>
    %c0_11 = arith.constant 0 : index
    %c0_12 = arith.constant 0 : index
    %18 = vector.load %arg5[%c0_11, %c0_12] : memref<32x16xf32, #tpu.memory_space<vmem>>, vector<32x16xf32>
    %cst_13 = arith.constant dense<0.000000e+00> : vector<16x16xf32>
    %19 = tpu.matmul %16, %18, %cst_13 {dimension_numbers = #tpu.dot_dimension_numbers<[1], [0], [0], [1], [0, 0, 1, 1], [], []>} : vector<16x32xf32>, vector<32x16xf32>, vector<16x16xf32> -> vector<16x16xf32>
    %20 = arith.addf %17, %19 : vector<16x16xf32>
    %c0_14 = arith.constant 0 : index
    %c0_15 = arith.constant 0 : index
    %21 = vector.load %arg8[%c0_14, %c0_15] : memref<16x16xf32, #tpu.memory_space<vmem>>, vector<16x16xf32>
    tpu.vector_store %arg8[%c0_14, %c0_15], %20 {strides = array<i32>} : memref<16x16xf32, #tpu.memory_space<vmem>>, vector<16x16xf32>,
    %c0_i32_16 = arith.constant 0 : i32
    %22 = arith.cmpi eq, %arg1, %c0_i32_16 : i32
    %23 = arith.extui %22 : i1 to i32
    %c0_i32_17 = arith.constant 0 : i32
    %24 = arith.cmpi ne, %23, %c0_i32_17 : i32
    scf.if %24 {
      %c0_18 = arith.constant 0 : index
      %c0_19 = arith.constant 0 : index
      %25 = vector.load %arg8[%c0_18, %c0_19] : memref<16x16xf32, #tpu.memory_space<vmem>>, vector<16x16xf32>
      %c0_20 = arith.constant 0 : index
      %c0_21 = arith.constant 0 : index
      %26 = vector.load %arg6[%c0_20, %c0_21] : memref<1x16xf32, #tpu.memory_space<vmem>>, vector<1x16xf32>
      %27 = vector.broadcast %26 : vector<1x16xf32> to vector<16x16xf32>
      %28 = arith.addf %25, %27 : vector<16x16xf32>
      %c0_22 = arith.constant 0 : index
      %c0_23 = arith.constant 0 : index
      %29 = vector.load %arg7[%c0_22, %c0_23] : memref<16x16xf32, #tpu.memory_space<vmem>>, vector<16x16xf32>
      tpu.vector_store %arg7[%c0_22, %c0_23], %28 {strides = array<i32>} : memref<16x16xf32, #tpu.memory_space<vmem>>, vector<16x16xf32>,
    } else {
    }
    return
  }
  func.func @transform_0(%arg0: i32, %arg1: i32) -> (i32, i32) {
    %c0_i32 = arith.constant 0 : i32
    %c0_i32_0 = arith.constant 0 : i32
    return %arg0, %c0_i32 : i32, i32
  }
  func.func @transform_1(%arg0: i32, %arg1: i32) -> (i32, i32) {
    %c0_i32 = arith.constant 0 : i32
    %c0_i32_0 = arith.constant 0 : i32
    return %c0_i32, %arg1 : i32, i32
  }
  func.func @transform_2(%arg0: i32, %arg1: i32) -> (i32, i32) {
    %c0_i32 = arith.constant 0 : i32
    %c0_i32_0 = arith.constant 0 : i32
    return %c0_i32, %arg1 : i32, i32
  }
  func.func @transform_3(%arg0: i32, %arg1: i32) -> (i32, i32) {
    %c0_i32 = arith.constant 0 : i32
    %c0_i32_0 = arith.constant 0 : i32
    return %arg1, %c0_i32 : i32, i32
  }
  func.func @transform_4(%arg0: i32, %arg1: i32) -> (i32, i32) {
    %c0_i32 = arith.constant 0 : i32
    %c0_i32_0 = arith.constant 0 : i32
    %c0_i32_1 = arith.constant 0 : i32
    return %c0_i32, %c0_i32_0 : i32, i32
  }
  func.func @transform_5(%arg0: i32, %arg1: i32) -> (i32, i32) {
    %c0_i32 = arith.constant 0 : i32
    %c0_i32_0 = arith.constant 0 : i32
    return %arg0, %c0_i32 : i32, i32
  }
}

</mosaic_0001>

<llo_original>
// kernel: mlp_pallas.1
$region0: #{mlp_pallas.1}
  #allocation0 [shape = 'u32[]', space=smem, size = 0x4, offset = 0x4, fixed_abs, tag = 'smem constant byte address 0x4 - core index']
  #allocation1 [shape = 'u32[72,128]{1,0:T(1,128)}', space=vmem, size = 0x9000, scoped, tag = 'internal scratch']
  #allocation2 [shape = 'f32[16,16]{1,0:T(8,128)}', space=vmem, size = 0x2000, scoped, tag = 'scratch operand']
  %s0 = inlined_call_operand.vmem [shape: f32[16,16], index: 0, kind: input, shape index: {}]
  %s1 = inlined_call_operand.vmem [shape: f32[16,32], index: 1, kind: input, shape index: {}]
  %s2 = inlined_call_operand.vmem [shape: f32[1,32], index: 2, kind: input, shape index: {}]
  %s3 = inlined_call_operand.vmem [shape: f32[32,16], index: 3, kind: input, shape index: {}]
  %s4 = inlined_call_operand.vmem [shape: f32[1,16], index: 4, kind: input, shape index: {}]
  %s5 = inlined_call_operand.hbm [shape: f32[16,16], index: 5, kind: output, shape index: {}]
  %s6 = sld [smem:[#allocation0]]
  $region38: #{mlp_pallas.1} parent=0
    _
  %s8 = ssub.s32 1, %s6
  %s9 = scalar_select 0, %s8, %s6
  $region1: #{mlp_pallas.1} parent=0
    #allocation3 [shape = 'u8[8192]{0}', space=vmem, size = 0x2000, scoped, tag = 'output window, operand 0, single buffered']
    #allocation4 [shape = 's32[1]{0}', space=sflag, size = 0x4, scoped, tag = 'scoped memory for mlp_pallas.1']
    %10 = vsyncpa [#allocation4], 0
    // Predicated region
    $region2: #{mlp_pallas.1} parent=1 // pred_check
      _
    $region3: #{mlp_pallas.1} parent=1 // pred_check_branch
      %12 = sbr.rel (0) target = $region5
    $region4: #{mlp_pallas.1} parent=1 // pred_region
      _
    $region5: #{mlp_pallas.1} parent=1 // pred_fallthru
      _
    // Predicated region
    $region6: #{mlp_pallas.1} parent=1 // pred_check
      _
    $region7: #{mlp_pallas.1} parent=1 // pred_check_branch
      %14 = sbr.rel (0) target = $region9
    $region8: #{mlp_pallas.1} parent=1 // pred_region
      _
    $region9: #{mlp_pallas.1} parent=1 // pred_fallthru
      _
    // Predicated region
    $region10: #{mlp_pallas.1} parent=1 // pred_check
      _
    $region11: #{mlp_pallas.1} parent=1 // pred_check_branch
      %16 = sbr.rel (0) target = $region13
    $region12: #{mlp_pallas.1} parent=1 // pred_region
      _
    $region13: #{mlp_pallas.1} parent=1 // pred_fallthru
      _
    // Predicated region
    $region14: #{mlp_pallas.1} parent=1 // pred_check
      _
    $region15: #{mlp_pallas.1} parent=1 // pred_check_branch
      %18 = sbr.rel (0) target = $region17
    $region16: #{mlp_pallas.1} parent=1 // pred_region
      _
    $region17: #{mlp_pallas.1} parent=1 // pred_fallthru
      _
    // Predicated region
    $region18: #{mlp_pallas.1} parent=1 // pred_check
      _
    $region19: #{mlp_pallas.1} parent=1 // pred_check_branch
      %20 = sbr.rel (0) target = $region21
    $region20: #{mlp_pallas.1} parent=1 // pred_region
      _
    $region21: #{mlp_pallas.1} parent=1 // pred_fallthru
      _
    %p21 = scmp.eq.s32.totalorder 0, 0
    // Predicated region
    $region22: #{mlp_pallas.1} parent=1 // pred_check
      %p22 = pneg %p21
    $region23: #{mlp_pallas.1} parent=1 // pred_check_branch
      %24 = sbr.rel (%p22) target = $region25
    $region24: #{mlp_pallas.1} parent=1 // pred_region
      %vm25 = vcmask 130048
      %26 = vst.msk [vmem:[#allocation2] sm:$0xff] %vm25, 0.0
      %27 = vst.msk [vmem:[#allocation2 + $0x8] sm:$0xff] %vm25, 0.0
    $region25: #{mlp_pallas.1} parent=1 // pred_fallthru
      _
    %v28 = vld [vmem:[%s0] sm:$0xff]
    %v29 = vld [vmem:[%s0 + $0x8] sm:$0xff]
    %v30 = vld [vmem:[%s1] sm:$0xff]
    %v31 = vld [vmem:[%s1 + $0x8] sm:$0xff]
    %v32 = vld [vmem:[%s2] sm:$0x1]
    %v34 = vperm.slane %v32, 0
    %vm36 = vcmask 130048
    %v38 = vsel %vm36, %v28, 0
    %v41 = vsel %vm36, %v29, 0
    %43 = vmatpush.msra.mxu0 0.0
    %44 = vmatpush.msra.mxu0 0.0
    %45 = vmatpush.msra.mxu0 0.0
    %46 = vmatpush.msra.mxu0 0.0
    %47 = vmatpush.msra.mxu0 0.0
    %48 = vmatpush.msra.mxu0 0.0
    %49 = vmatpush.msra.mxu0 0.0
    %50 = vmatpush.msra.mxu0 0.0
    %51 = vmatpush.msra.mxu0 0.0
    %52 = vmatpush.msra.mxu0 0.0
    %53 = vmatpush.msra.mxu0 0.0
    %54 = vmatpush.msra.mxu0 0.0
    %55 = vmatpush.msra.mxu0 0.0
    %56 = vmatpush.msra.mxu0 0.0
    %57 = vmatpush.msra.mxu0 %v31
    %58 = vmatpush.msra.mxu0 %v30
    %59 = vmatmul.f32.gmra.mxu0 %v38
    %v60 = vpop.f32.mrf.mxu0
    %v61 = vadd.f32 %v34, %v60
    %62 = vmatmul.f32.gmra.mxu0 %v41
    %v63 = vpop.f32.mrf.mxu0
    %v64 = vadd.f32 %v34, %v63
    %65 = vdwg.mxu0
    %v66 = vmul.f32 %v61, 0.5
    %v67 = vmul.f32 %v64, 0.5
    %v68 = vmul.f32 %v61, 0.70710677
    %v69 = vmul.f32 %v64, 0.70710677
    %v70 = vmul.f32 %v68, %v68
    %v71 = vmin.f32 16.0, %v70
    %v72 = vmul.f32 %v71, 2.1237322e-06
    %v73 = vadd.f32 %v72, 0.00028619796
    %v74 = vmul.f32 %v71, %v73
    %v75 = vadd.f32 %v74, 0.0036580483
    %v76 = vmul.f32 %v71, %v75
    %v77 = vadd.f32 %v76, 0.05243302
    %v78 = vmul.f32 %v71, %v77
    %v79 = vadd.f32 %v78, 0.18741608
    %v80 = vmul.f32 %v71, %v79
    %v81 = vadd.f32 %v80, 1.1283791
    %v82 = vmul.f32 %v68, %v81
    %v83 = vmul.f32 %v71, 3.8918573e-05
    %v84 = vadd.f32 %v83, 0.001143296
    %v85 = vmul.f32 %v71, %v84
    %v86 = vadd.f32 %v85, 0.014752088
    %v87 = vmul.f32 %v71, %v86
    %v88 = vadd.f32 %v87, 0.112945676
    %v89 = vmul.f32 %v71, %v88
    %v90 = vadd.f32 %v89, 0.4994258
    %v91 = vmul.f32 %v71, %v90
    %v92 = vadd.f32 %v91, 1.0
    %v93 = vrcp.pop %v92
    %v94 = vmul.f32 %v92, %v93
    %v95 = vsub.f32 1.0, %v94
    %v96 = vmul.f32 %v93, %v95
    %v97 = vadd.f32 %v93, %v96
    %vm98 = vweird.f32 %v92
    %vm99 = vweird.f32 %v93
    %vm100 = vmor %vm98, %vm99
    %v101 = vsel %vm100, %v93, %v97
    %v102 = vand.u32 2147483647, %v92
    %vm103 = vcmp.eq.f32.partialorder %v102, 8.507059e+37
    %v104 = vand.u32 %v92, 2147483648
    %v105 = vor.u32 1.1754944e-38, %v104
    %v106 = vsel %vm103, %v105, %v101
    %v107 = vmul.f32 %v82, %v106
    %v108 = vmin.f32 %v107, 1.0
    %v109 = vmax.f32 %v108, -1.0
    %v110 = vmul.f32 %v69, %v69
    %v111 = vmin.f32 16.0, %v110
    %v112 = vmul.f32 %v111, 2.1237322e-06
    %v113 = vadd.f32 %v112, 0.00028619796
    %v114 = vmul.f32 %v111, %v113
    %v115 = vadd.f32 %v114, 0.0036580483
    %v116 = vmul.f32 %v111, %v115
    %v117 = vadd.f32 %v116, 0.05243302
    %v118 = vmul.f32 %v111, %v117
    %v119 = vadd.f32 %v118, 0.18741608
    %v120 = vmul.f32 %v111, %v119
    %v121 = vadd.f32 %v120, 1.1283791
    %v122 = vmul.f32 %v69, %v121
    %v123 = vmul.f32 %v111, 3.8918573e-05
    %v124 = vadd.f32 %v123, 0.001143296
    %v125 = vmul.f32 %v111, %v124
    %v126 = vadd.f32 %v125, 0.014752088
    %v127 = vmul.f32 %v111, %v126
    %v128 = vadd.f32 %v127, 0.112945676
    %v129 = vmul.f32 %v111, %v128
    %v130 = vadd.f32 %v129, 0.4994258
    %v131 = vmul.f32 %v111, %v130
    %v132 = vadd.f32 %v131, 1.0
    %v133 = vrcp.pop %v132
    %v134 = vmul.f32 %v132, %v133
    %v135 = vsub.f32 1.0, %v134
    %v136 = vmul.f32 %v133, %v135
    %v137 = vadd.f32 %v133, %v136
    %vm138 = vweird.f32 %v132
    %vm139 = vweird.f32 %v133
    %vm140 = vmor %vm138, %vm139
    %v141 = vsel %vm140, %v133, %v137
    %v142 = vand.u32 2147483647, %v132
    %vm143 = vcmp.eq.f32.partialorder %v142, 8.507059e+37
    %v144 = vand.u32 %v132, 2147483648
    %v145 = vor.u32 1.1754944e-38, %v144
    %v146 = vsel %vm143, %v145, %v141
    %v147 = vmul.f32 %v122, %v146
    %v148 = vmin.f32 %v147, 1.0
    %v149 = vmax.f32 %v148, -1.0
    %v150 = vadd.f32 %v109, 1.0
    %v151 = vadd.f32 %v149, 1.0
    %v152 = vmul.f32 %v66, %v150
    %v153 = vmul.f32 %v67, %v151
    %v154 = vld [vmem:[#allocation2] sm:$0xff]
    %v155 = vld [vmem:[#allocation2 + $0x8] sm:$0xff]
    %v156 = vld [vmem:[%s3] sm:$0xff]
    %v157 = vld [vmem:[%s3 + $0x8] sm:$0xff]
    %v158 = vld [vmem:[%s3 + $0x10] sm:$0xff]
    %v159 = vld [vmem:[%s3 + $0x18] sm:$0xff]
    %vm160 = vcmask 261120
    %v162 = vsel %vm160, %v152, 0
    %v165 = vsel %vm160, %v153, 0
    %167 = vmatpush.msra.mxu0 0.0
    %168 = vmatpush.msra.mxu0 0.0
    %169 = vmatpush.msra.mxu0 0.0
    %170 = vmatpush.msra.mxu0 0.0
    %171 = vmatpush.msra.mxu0 0.0
    %172 = vmatpush.msra.mxu0 0.0
    %173 = vmatpush.msra.mxu0 0.0
    %174 = vmatpush.msra.mxu0 0.0
    %175 = vmatpush.msra.mxu0 0.0
    %176 = vmatpush.msra.mxu0 0.0
    %177 = vmatpush.msra.mxu0 0.0
    %178 = vmatpush.msra.mxu0 0.0
    %179 = vmatpush.msra.mxu0 %v159
    %180 = vmatpush.msra.mxu0 %v158
    %181 = vmatpush.msra.mxu0 %v157
    %182 = vmatpush.msra.mxu0 %v156
    %183 = vmatmul.f32.gmra.mxu0 %v162
    %v184 = vpop.f32.mrf.mxu0
    %v185 = vadd.f32 0.0, %v184
    %186 = vmatmul.f32.gmra.mxu0 %v165
    %v187 = vpop.f32.mrf.mxu0
    %v188 = vadd.f32 0.0, %v187
    %189 = vdwg.mxu0
    %v190 = vadd.f32 %v154, %v185
    %v191 = vadd.f32 %v155, %v188
    %192 = vst.msk [vmem:[#allocation2] sm:$0xff] %vm36, %v190
    %193 = vst.msk [vmem:[#allocation2 + $0x8] sm:$0xff] %vm36, %v191
    // Predicated region
    $region26: #{mlp_pallas.1} parent=1 // pred_check
      %p194 = pneg %p21
    $region27: #{mlp_pallas.1} parent=1 // pred_check_branch
      %196 = sbr.rel (%p194) target = $region29
    $region28: #{mlp_pallas.1} parent=1 // pred_region
      %v197 = vld [vmem:[#allocation2] sm:$0xff]
      %v198 = vld [vmem:[#allocation2 + $0x8] sm:$0xff]
      %v199 = vld [vmem:[%s4] sm:$0x1]
      %v201 = vperm.slane %v199, 0
      %v203 = vadd.f32 %v197, %v201
      %v204 = vadd.f32 %v198, %v201
      %205 = vst.msk [vmem:[#allocation3] sm:$0xff] %vm36, %v203
      %206 = vst.msk [vmem:[#allocation3 + $0x8] sm:$0xff] %vm36, %v204
    $region29: #{mlp_pallas.1} parent=1 // pred_fallthru
      _
    // Predicated region
    $region30: #{mlp_pallas.1} parent=1 // pred_check
      _
    $region31: #{mlp_pallas.1} parent=1 // pred_check_branch
      %208 = sbr.rel (0) target = $region33
    $region32: #{mlp_pallas.1} parent=1 // pred_region
      %210 = vsyncadd [#allocation4], 0
      %s211 = sshll.u32 [#allocation3], 4
      %s212 = int_to_ptr.vmem [resolvable:$true] %s211
      %s213 = sshll.u32 %s5, 4
      %s214 = int_to_ptr.hbm [resolvable:$true] %s213
      %219 = dma.vmem_to_hbm [thread:$0]  %s212, 256, %s214, [#allocation4], 128, 128, 8
    $region33: #{mlp_pallas.1} parent=1 // pred_fallthru
      _
    // Predicated region
    $region34: #{mlp_pallas.1} parent=1 // pred_check
      _
    $region35: #{mlp_pallas.1} parent=1 // pred_check_branch
      %221 = sbr.rel (0) target = $region37
    $region36: #{mlp_pallas.1} parent=1 // pred_region
      %223 = dma.done [#allocation4], 256
    $region37: #{mlp_pallas.1} parent=1 // pred_fallthru
      _
    %224 = vsyncpa [#allocation4], 1

</llo_original>
